<compile_context>
chip_gen: v7x
topology: tpu7x:2x2x1
jax: 0.10.0
libtpu: 0.0.40
codegen_flags: <defaults>
</compile_context>

<pallas_src>
import jax
import jax.numpy as jnp
from jax.experimental import pallas as pl
from jax.experimental.pallas import tpu as pltpu


def _round_up(v: int, m: int) -> int:
    return (v + m - 1) // m * m


def _mlp_kernel(x_ref, w1_ref, b1_ref, w2_ref, b2_ref, out_ref):
    # x_ref  : (TB, D_in_pad)       f32   VMEM (tile of the batch)
    # w1_ref : (D_in_pad, H)        bf16  VMEM (resident across grid steps)
    # b1_ref : (1, H)               f32   VMEM
    # w2_ref : (H, D_out_pad)       bf16  VMEM
    # b2_ref : (1, D_out_pad)       f32   VMEM
    # out_ref: (TB, D_out_pad)      f32   VMEM
    x = x_ref[...].astype(jnp.bfloat16)

    # fc1 + bias + ReLU  (MXU bf16 matmul, f32 accumulate; bias+max on VPU)
    h = jnp.dot(x, w1_ref[...], preferred_element_type=jnp.float32)
    h = jnp.maximum(h + b1_ref[...], 0.0)

    # fc2 + bias (lane-dense padded output -> unmasked vst)
    o = jnp.dot(h.astype(jnp.bfloat16), w2_ref[...],
                preferred_element_type=jnp.float32)
    o = o + b2_ref[...]

    out_ref[...] = o.astype(out_ref.dtype)


def my_method_forward(x, w1, b1, w2, b2, *, block_batch=256):
    """x: (B, ...) flattened to (B, input_dim). Returns (B, output_dim) f32.

    w1: (input_dim, hidden)   bf16 (or castable)
    b1: (hidden,) / (1, hidden) f32
    w2: (hidden, output_dim)  bf16 (or castable)
    b2: (output_dim,) / (1, output_dim) f32
    """
    batch = x.shape[0]
    x2d = x.reshape(batch, -1).astype(jnp.float32)
    d_in = x2d.shape[1]
    hidden = w1.shape[1]
    d_out = w2.shape[1]

    # --- lane-dense contraction dim: pad input features to a multiple of 128
    d_in_pad = max(_round_up(d_in, 128), 128)
    if d_in_pad != d_in:
        x2d = jnp.pad(x2d, ((0, 0), (0, d_in_pad - d_in)))
    w1p = jnp.zeros((d_in_pad, hidden), jnp.bfloat16)
    w1p = w1p.at[:d_in, :].set(w1.astype(jnp.bfloat16))
    b1r = b1.reshape(1, hidden).astype(jnp.float32)

    # --- lane-dense output dim: pad output features to a multiple of 128
    d_out_pad = max(_round_up(d_out, 128), 128)
    w2p = jnp.zeros((hidden, d_out_pad), jnp.bfloat16)
    w2p = w2p.at[:, :d_out].set(w2.astype(jnp.bfloat16))
    b2p = jnp.zeros((1, d_out_pad), jnp.float32)
    b2p = b2p.at[:, :d_out].set(b2.reshape(1, -1).astype(jnp.float32))

    # --- batch tiling: TB multiple of 16, capped; pad batch to a TB multiple
    tb = min(block_batch, _round_up(batch, 16))
    padded_batch = _round_up(batch, tb)
    if padded_batch != batch:
        x2d = jnp.pad(x2d, ((0, padded_batch - batch), (0, 0)))
    grid = (padded_batch // tb,)

    flops = 2 * padded_batch * (d_in_pad * hidden + hidden * d_out_pad)
    bytes_accessed = (
        padded_batch * d_in_pad * 4        # x (f32)
        + d_in_pad * hidden * 2            # w1 (bf16)
        + hidden * d_out_pad * 2           # w2 (bf16)
        + (hidden + d_out_pad) * 4         # biases (f32)
        + padded_batch * d_out_pad * 4     # out (f32)
    )

    out = pl.pallas_call(
        _mlp_kernel,
        out_shape=jax.ShapeDtypeStruct((padded_batch, d_out_pad), jnp.float32),
        grid=grid,
        in_specs=[
            pl.BlockSpec((tb, d_in_pad), lambda i: (i, 0)),        # x tile moves
            pl.BlockSpec((d_in_pad, hidden), lambda i: (0, 0)),    # w1 resident
            pl.BlockSpec((1, hidden), lambda i: (0, 0)),           # b1 resident
            pl.BlockSpec((hidden, d_out_pad), lambda i: (0, 0)),   # w2 resident
            pl.BlockSpec((1, d_out_pad), lambda i: (0, 0)),        # b2 resident
        ],
        out_specs=pl.BlockSpec((tb, d_out_pad), lambda i: (i, 0)),
        compiler_params=pltpu.CompilerParams(
            dimension_semantics=("parallel",),  # v7x: shard batch over 2 TCs
        ),
        cost_estimate=pl.CostEstimate(
            flops=flops, transcendentals=0, bytes_accessed=bytes_accessed),
    )(x2d, w1p, b1r, w2p, b2p)

    return out[:batch, :d_out]


def init_params(key, input_dim=784, hidden_dim=128, output_dim=10):
    """Deterministic init mimicking nn.Linear (uniform(-1/sqrt(fan_in), +)).

    Weights are stored pre-transposed to (in, out) and in bf16 (HBM traffic /
    MXU-rate win on v6e/v7x); biases stay f32.
    """
    k1, k2, k3, k4 = jax.random.split(key, 4)
    bound1 = 1.0 / (input_dim ** 0.5)
    bound2 = 1.0 / (hidden_dim ** 0.5)
    w1 = jax.random.uniform(k1, (input_dim, hidden_dim), jnp.float32,
                            -bound1, bound1).astype(jnp.bfloat16)
    b1 = jax.random.uniform(k2, (1, hidden_dim), jnp.float32, -bound1, bound1)
    w2 = jax.random.uniform(k3, (hidden_dim, output_dim), jnp.float32,
                            -bound2, bound2).astype(jnp.bfloat16)
    b2 = jax.random.uniform(k4, (1, output_dim), jnp.float32, -bound2, bound2)
    return w1, b1, w2, b2


if __name__ == "__main__":
    input_dim, hidden_dim, output_dim = 784, 128, 10
    batch = 8

    key = jax.random.PRNGKey(0)
    kx, kp = jax.random.split(key)
    # MNIST-like input: (B, 1, 28, 28) -> flattened to 784 in forward
    x = jax.random.normal(kx, (batch, 1, 28, 28), jnp.float32)
    w1, b1, w2, b2 = init_params(kp, input_dim, hidden_dim, output_dim)

    out = my_method_forward(x, w1, b1, w2, b2)
    out = jax.block_until_ready(out)

    # correctness check vs plain-JAX reference using the same bf16 rounding
    x2d = x.reshape(batch, -1)
    x_bf = x2d.astype(jnp.bfloat16).astype(jnp.float32)
    w1f = w1.astype(jnp.float32)
    w2f = w2.astype(jnp.float32)
    h_ref = jnp.maximum(x_bf @ w1f + b1, 0.0)
    h_bf = h_ref.astype(jnp.bfloat16).astype(jnp.float32)
    ref = h_bf @ w2f + b2

    assert out.shape == (batch, output_dim)
    assert jnp.allclose(out, ref, atol=2e-2, rtol=2e-2)

    print("KERNEL_OK")
</pallas_src>

<mosaic_0001>
module attributes {stable_mosaic.version = 11 : i64} {
  func.func @_mlp_kernel(%arg0: i32, %arg1: memref<16x896xf32, #tpu.memory_space<vmem>>, %arg2: memref<896x128xbf16, #tpu.memory_space<vmem>>, %arg3: memref<1x128xf32, #tpu.memory_space<vmem>>, %arg4: memref<128x128xbf16, #tpu.memory_space<vmem>>, %arg5: memref<1x128xf32, #tpu.memory_space<vmem>>, %arg6: memref<16x128xf32, #tpu.memory_space<vmem>>) attributes {dimension_semantics = [#tpu.dimension_semantics<parallel>], iteration_bounds = array<i64: 1>, scalar_prefetch = 0 : i64, scratch_operands = 0 : i64, tpu.core_type = #tpu.core_type<tc>, window_params = [{transform_indices = @transform_0, window_bounds = array<i64: 16, 896>}, {pipeline_mode = #tpu.pipeline_mode<synchronous>, transform_indices = @transform_1, window_bounds = array<i64: 896, 128>}, {pipeline_mode = #tpu.pipeline_mode<synchronous>, transform_indices = @transform_2, window_bounds = array<i64: 1, 128>}, {pipeline_mode = #tpu.pipeline_mode<synchronous>, transform_indices = @transform_3, window_bounds = array<i64: 128, 128>}, {pipeline_mode = #tpu.pipeline_mode<synchronous>, transform_indices = @transform_4, window_bounds = array<i64: 1, 128>}, {transform_indices = @transform_5, window_bounds = array<i64: 16, 128>}]} {
    %c0 = arith.constant 0 : index
    %c0_0 = arith.constant 0 : index
    %0 = vector.load %arg1[%c0, %c0_0] : memref<16x896xf32, #tpu.memory_space<vmem>>, vector<16x896xf32>
    %1 = arith.truncf %0 : vector<16x896xf32> to vector<16x896xbf16>
    %c0_1 = arith.constant 0 : index
    %c0_2 = arith.constant 0 : index
    %2 = vector.load %arg2[%c0_1, %c0_2] : memref<896x128xbf16, #tpu.memory_space<vmem>>, vector<896x128xbf16>
    %cst = arith.constant dense<0.000000e+00> : vector<16x128xf32>
    %3 = tpu.matmul %1, %2, %cst {dimension_numbers = #tpu.dot_dimension_numbers<[1], [0], [0], [1], [0, 0, 1, 1], [], []>} : vector<16x896xbf16>, vector<896x128xbf16>, vector<16x128xf32> -> vector<16x128xf32>
    %c0_3 = arith.constant 0 : index
    %c0_4 = arith.constant 0 : index
    %4 = vector.load %arg3[%c0_3, %c0_4] : memref<1x128xf32, #tpu.memory_space<vmem>>, vector<1x128xf32>
    %5 = vector.broadcast %4 : vector<1x128xf32> to vector<16x128xf32>
    %6 = arith.addf %3, %5 : vector<16x128xf32>
    %cst_5 = arith.constant 0.000000e+00 : f32
    %7 = vector.broadcast %cst_5 : f32 to vector<16x128xf32>
    %8 = arith.maximumf %6, %7 : vector<16x128xf32>
    %9 = arith.truncf %8 : vector<16x128xf32> to vector<16x128xbf16>
    %c0_6 = arith.constant 0 : index
    %c0_7 = arith.constant 0 : index
    %10 = vector.load %arg4[%c0_6, %c0_7] : memref<128x128xbf16, #tpu.memory_space<vmem>>, vector<128x128xbf16>
    %cst_8 = arith.constant dense<0.000000e+00> : vector<16x128xf32>
    %11 = tpu.matmul %9, %10, %cst_8 {dimension_numbers = #tpu.dot_dimension_numbers<[1], [0], [0], [1], [0, 0, 1, 1], [], []>} : vector<16x128xbf16>, vector<128x128xbf16>, vector<16x128xf32> -> vector<16x128xf32>
    %c0_9 = arith.constant 0 : index
    %c0_10 = arith.constant 0 : index
    %12 = vector.load %arg5[%c0_9, %c0_10] : memref<1x128xf32, #tpu.memory_space<vmem>>, vector<1x128xf32>
    %13 = vector.broadcast %12 : vector<1x128xf32> to vector<16x128xf32>
    %14 = arith.addf %11, %13 : vector<16x128xf32>
    %c0_11 = arith.constant 0 : index
    %c0_12 = arith.constant 0 : index
    %15 = vector.load %arg6[%c0_11, %c0_12] : memref<16x128xf32, #tpu.memory_space<vmem>>, vector<16x128xf32>
    tpu.vector_store %arg6[%c0_11, %c0_12], %14 {strides = array<i32>} : memref<16x128xf32, #tpu.memory_space<vmem>>, vector<16x128xf32>,
    return
  }
  func.func @transform_0(%arg0: i32) -> (i32, i32) {
    %c0_i32 = arith.constant 0 : i32
    %c0_i32_0 = arith.constant 0 : i32
    return %arg0, %c0_i32 : i32, i32
  }
  func.func @transform_1(%arg0: i32) -> (i32, i32) {
    %c0_i32 = arith.constant 0 : i32
    %c0_i32_0 = arith.constant 0 : i32
    %c0_i32_1 = arith.constant 0 : i32
    return %c0_i32, %c0_i32_0 : i32, i32
  }
  func.func @transform_2(%arg0: i32) -> (i32, i32) {
    %c0_i32 = arith.constant 0 : i32
    %c0_i32_0 = arith.constant 0 : i32
    %c0_i32_1 = arith.constant 0 : i32
    return %c0_i32, %c0_i32_0 : i32, i32
  }
  func.func @transform_3(%arg0: i32) -> (i32, i32) {
    %c0_i32 = arith.constant 0 : i32
    %c0_i32_0 = arith.constant 0 : i32
    %c0_i32_1 = arith.constant 0 : i32
    return %c0_i32, %c0_i32_0 : i32, i32
  }
  func.func @transform_4(%arg0: i32) -> (i32, i32) {
    %c0_i32 = arith.constant 0 : i32
    %c0_i32_0 = arith.constant 0 : i32
    %c0_i32_1 = arith.constant 0 : i32
    return %c0_i32, %c0_i32_0 : i32, i32
  }
  func.func @transform_5(%arg0: i32) -> (i32, i32) {
    %c0_i32 = arith.constant 0 : i32
    %c0_i32_0 = arith.constant 0 : i32
    return %arg0, %c0_i32 : i32, i32
  }
}

</mosaic_0001>

<llo_original>
// kernel: tpu_custom_call.1
$region0: #{tpu_custom_call.1}
  #allocation0 [shape = 'u32[]', space=smem, size = 0x4, offset = 0x4, fixed_abs, tag = 'smem constant byte address 0x4 - core index']
  #allocation1 [shape = 'u32[144,128]{1,0:T(1,128)}', space=vmem, size = 0x12000, scoped, tag = 'internal scratch']
  %s0 = inlined_call_operand.hbm [shape: f32[16,896], index: 0, kind: input, shape index: {}]
  %s1 = inlined_call_operand.hbm [shape: bf16[896,128], index: 1, kind: input, shape index: {}]
  %s2 = inlined_call_operand.vmem [shape: f32[1,128], index: 2, kind: input, shape index: {}]
  %s3 = inlined_call_operand.hbm [shape: bf16[128,128], index: 3, kind: input, shape index: {}]
  %s4 = inlined_call_operand.vmem [shape: f32[1,128], index: 4, kind: input, shape index: {}]
  %s5 = inlined_call_operand.hbm [shape: f32[16,128], index: 5, kind: output, shape index: {}]
  %s6 = sld [smem:[#allocation0]]
  $region42: #{tpu_custom_call.1} parent=0
    _
  %s8 = ssub.s32 1, %s6
  %s9 = scalar_select 0, %s8, %s6
  $region1: #{tpu_custom_call.1} parent=0
    #allocation2 [shape = 'u8[57344]{0}', space=vmem, size = 0xe000, scoped, tag = 'input window, operand 0, single buffered']
    #allocation3 [shape = 's32[1]{0}', space=sflag, size = 0x4, scoped, tag = 'scoped memory for tpu_custom_call.1']
    #allocation4 [shape = 's32[1]{0}', space=sflag, size = 0x4, scoped, tag = 'scoped memory for tpu_custom_call.1']
    #allocation5 [shape = 'u8[229376]{0}', space=vmem, size = 0x38000, scoped, tag = 'input window, operand 1, single buffered']
    #allocation6 [shape = 's32[1]{0}', space=sflag, size = 0x4, scoped, tag = 'scoped memory for tpu_custom_call.1']
    #allocation7 [shape = 'u8[32768]{0}', space=vmem, size = 0x8000, scoped, tag = 'input window, operand 3, single buffered']
    #allocation8 [shape = 'u8[8192]{0}', space=vmem, size = 0x2000, scoped, tag = 'output window, operand 0, single buffered']
    %10 = vsyncpa [#allocation3], 0
    %11 = vsyncpa [#allocation6], 0
    %12 = vsyncpa [#allocation4], 0
    // Predicated region
    $region2: #{tpu_custom_call.1} parent=1 // pred_check
      _
    $region3: #{tpu_custom_call.1} parent=1 // pred_check_branch
      %14 = sbr.rel (0) target = $region5
    $region4: #{tpu_custom_call.1} parent=1 // pred_region
      %s16 = ssub.s32 1792, 1792
      %17 = vsyncadd [#allocation3], %s16
      %s18 = sshll.u32 [#allocation2], 4
      %s19 = int_to_ptr.vmem [resolvable:$true] %s18
      %24 = dma.hbm_to_vmem [thread:$0]  %s0, 1792, %s19, [#allocation3], 896, 896, 56
    $region5: #{tpu_custom_call.1} parent=1 // pred_fallthru
      _
    // Predicated region
    $region6: #{tpu_custom_call.1} parent=1 // pred_check
      _
    $region7: #{tpu_custom_call.1} parent=1 // pred_check_branch
      %26 = sbr.rel (0) target = $region9
    $region8: #{tpu_custom_call.1} parent=1 // pred_region
      %s28 = ssub.s32 7168, 7168
      %29 = vsyncadd [#allocation6], %s28
      %s30 = sshll.u32 [#allocation5], 4
      %s31 = int_to_ptr.vmem [resolvable:$true] %s30
      %36 = dma.hbm_to_vmem [thread:$0]  %s1, 7168, %s31, [#allocation6], 64, 64, 4
    $region9: #{tpu_custom_call.1} parent=1 // pred_fallthru
      _
    // Predicated region
    $region10: #{tpu_custom_call.1} parent=1 // pred_check
      _
    $region11: #{tpu_custom_call.1} parent=1 // pred_check_branch
      %38 = sbr.rel (0) target = $region13
    $region12: #{tpu_custom_call.1} parent=1 // pred_region
      _
    $region13: #{tpu_custom_call.1} parent=1 // pred_fallthru
      _
    // Predicated region
    $region14: #{tpu_custom_call.1} parent=1 // pred_check
      _
    $region15: #{tpu_custom_call.1} parent=1 // pred_check_branch
      %40 = sbr.rel (0) target = $region17
    $region16: #{tpu_custom_call.1} parent=1 // pred_region
      %s42 = ssub.s32 1024, 1024
      %43 = vsyncadd [#allocation6], %s42
      %s44 = sshll.u32 [#allocation7], 4
      %s45 = int_to_ptr.vmem [resolvable:$true] %s44
      %50 = dma.hbm_to_vmem [thread:$0]  %s3, 1024, %s45, [#allocation6], 64, 64, 4
    $region17: #{tpu_custom_call.1} parent=1 // pred_fallthru
      _
    // Predicated region
    $region18: #{tpu_custom_call.1} parent=1 // pred_check
      _
    $region19: #{tpu_custom_call.1} parent=1 // pred_check_branch
      %52 = sbr.rel (0) target = $region21
    $region20: #{tpu_custom_call.1} parent=1 // pred_region
      _
    $region21: #{tpu_custom_call.1} parent=1 // pred_fallthru
      _
    // Predicated region
    $region22: #{tpu_custom_call.1} parent=1 // pred_check
      _
    $region23: #{tpu_custom_call.1} parent=1 // pred_check_branch
      %54 = sbr.rel (0) target = $region25
    $region24: #{tpu_custom_call.1} parent=1 // pred_region
      %55 = dma.done [#allocation3], 1792
    $region25: #{tpu_custom_call.1} parent=1 // pred_fallthru
      _
    // Predicated region
    $region26: #{tpu_custom_call.1} parent=1 // pred_check
      _
    $region27: #{tpu_custom_call.1} parent=1 // pred_check_branch
      %57 = sbr.rel (0) target = $region29
    $region28: #{tpu_custom_call.1} parent=1 // pred_region
      %58 = dma.done [#allocation6], 7168
    $region29: #{tpu_custom_call.1} parent=1 // pred_fallthru
      _
    // Predicated region
    $region30: #{tpu_custom_call.1} parent=1 // pred_check
      _
    $region31: #{tpu_custom_call.1} parent=1 // pred_check_branch
      %60 = sbr.rel (0) target = $region33
    $region32: #{tpu_custom_call.1} parent=1 // pred_region
      %61 = dma.done [#allocation6], 1024
    $region33: #{tpu_custom_call.1} parent=1 // pred_fallthru
      _
    %v63 = vld [vmem:[#allocation2] sm:$0xff]
    %v64 = vld [vmem:[#allocation2 + $0x8] sm:$0xff]
    %v65 = vld [vmem:[#allocation2 + $0x10] sm:$0xff]
    %v66 = vld [vmem:[#allocation2 + $0x18] sm:$0xff]
    %v67 = vld [vmem:[#allocation2 + $0x20] sm:$0xff]
    %v68 = vld [vmem:[#allocation2 + $0x28] sm:$0xff]
    %v69 = vld [vmem:[#allocation2 + $0x30] sm:$0xff]
    %v70 = vld [vmem:[#allocation2 + $0x38] sm:$0xff]
    %v71 = vld [vmem:[#allocation2 + $0x40] sm:$0xff]
    %v72 = vld [vmem:[#allocation2 + $0x48] sm:$0xff]
    %v73 = vld [vmem:[#allocation2 + $0x50] sm:$0xff]
    %v74 = vld [vmem:[#allocation2 + $0x58] sm:$0xff]
    %v75 = vld [vmem:[#allocation2 + $0x60] sm:$0xff]
    %v76 = vld [vmem:[#allocation2 + $0x68] sm:$0xff]
    %v77 = vpack.c.bf16 %v70, %v63
    %v78 = vpack.c.bf16 %v71, %v64
    %v79 = vpack.c.bf16 %v72, %v65
    %v80 = vpack.c.bf16 %v73, %v66
    %v81 = vpack.c.bf16 %v74, %v67
    %v82 = vpack.c.bf16 %v75, %v68
    %v83 = vpack.c.bf16 %v76, %v69
    %v84 = vld [vmem:[#allocation5] sm:$0xf]
    %v85 = vld [vmem:[#allocation5 + $0x4] sm:$0xf]
    %v86 = vld [vmem:[#allocation5 + $0x8] sm:$0xf]
    %v87 = vld [vmem:[#allocation5 + $0xc] sm:$0xf]
    %v88 = vld [vmem:[#allocation5 + $0x10] sm:$0xf]
    %v89 = vld [vmem:[#allocation5 + $0x14] sm:$0xf]
    %v90 = vld [vmem:[#allocation5 + $0x18] sm:$0xf]
    %v91 = vld [vmem:[#allocation5 + $0x1c] sm:$0xf]
    %v92 = vld [vmem:[#allocation5 + $0x20] sm:$0xf]
    %v93 = vld [vmem:[#allocation5 + $0x24] sm:$0xf]
    %v94 = vld [vmem:[#allocation5 + $0x28] sm:$0xf]
    %v95 = vld [vmem:[#allocation5 + $0x2c] sm:$0xf]
    %v96 = vld [vmem:[#allocation5 + $0x30] sm:$0xf]
    %v97 = vld [vmem:[#allocation5 + $0x34] sm:$0xf]
    %v98 = vld [vmem:[#allocation5 + $0x38] sm:$0xf]
    %v99 = vld [vmem:[#allocation5 + $0x3c] sm:$0xf]
    %v100 = vld [vmem:[#allocation5 + $0x40] sm:$0xf]
    %v101 = vld [vmem:[#allocation5 + $0x44] sm:$0xf]
    %v102 = vld [vmem:[#allocation5 + $0x48] sm:$0xf]
    %v103 = vld [vmem:[#allocation5 + $0x4c] sm:$0xf]
    %v104 = vld [vmem:[#allocation5 + $0x50] sm:$0xf]
    %v105 = vld [vmem:[#allocation5 + $0x54] sm:$0xf]
    %v106 = vld [vmem:[#allocation5 + $0x58] sm:$0xf]
    %v107 = vld [vmem:[#allocation5 + $0x5c] sm:$0xf]
    %v108 = vld [vmem:[#allocation5 + $0x60] sm:$0xf]
    %v109 = vld [vmem:[#allocation5 + $0x64] sm:$0xf]
    %v110 = vld [vmem:[#allocation5 + $0x68] sm:$0xf]
    %v111 = vld [vmem:[#allocation5 + $0x6c] sm:$0xf]
    %v112 = vld [vmem:[#allocation5 + $0x70] sm:$0xf]
    %v113 = vld [vmem:[#allocation5 + $0x74] sm:$0xf]
    %v114 = vld [vmem:[#allocation5 + $0x78] sm:$0xf]
    %v115 = vld [vmem:[#allocation5 + $0x7c] sm:$0xf]
    %v116 = vld [vmem:[#allocation5 + $0x80] sm:$0xf]
    %v117 = vld [vmem:[#allocation5 + $0x84] sm:$0xf]
    %v118 = vld [vmem:[#allocation5 + $0x88] sm:$0xf]
    %v119 = vld [vmem:[#allocation5 + $0x8c] sm:$0xf]
    %v120 = vld [vmem:[#allocation5 + $0x90] sm:$0xf]
    %v121 = vld [vmem:[#allocation5 + $0x94] sm:$0xf]
    %v122 = vld [vmem:[#allocation5 + $0x98] sm:$0xf]
    %v123 = vld [vmem:[#allocation5 + $0x9c] sm:$0xf]
    %v124 = vld [vmem:[#allocation5 + $0xa0] sm:$0xf]
    %v125 = vld [vmem:[#allocation5 + $0xa4] sm:$0xf]
    %v126 = vld [vmem:[#allocation5 + $0xa8] sm:$0xf]
    %v127 = vld [vmem:[#allocation5 + $0xac] sm:$0xf]
    %v128 = vld [vmem:[#allocation5 + $0xb0] sm:$0xf]
    %v129 = vld [vmem:[#allocation5 + $0xb4] sm:$0xf]
    %v130 = vld [vmem:[#allocation5 + $0xb8] sm:$0xf]
    %v131 = vld [vmem:[#allocation5 + $0xbc] sm:$0xf]
    %v132 = vld [vmem:[#allocation5 + $0xc0] sm:$0xf]
    %v133 = vld [vmem:[#allocation5 + $0xc4] sm:$0xf]
    %v134 = vld [vmem:[#allocation5 + $0xc8] sm:$0xf]
    %v135 = vld [vmem:[#allocation5 + $0xcc] sm:$0xf]
    %v136 = vld [vmem:[#allocation5 + $0xd0] sm:$0xf]
    %v137 = vld [vmem:[#allocation5 + $0xd4] sm:$0xf]
    %v138 = vld [vmem:[#allocation5 + $0xd8] sm:$0xf]
    %v139 = vld [vmem:[#allocation5 + $0xdc] sm:$0xf]
    %v140 = vld [vmem:[#allocation5 + $0xe0] sm:$0xf]
    %v141 = vld [vmem:[#allocation5 + $0xe4] sm:$0xf]
    %v142 = vld [vmem:[#allocation5 + $0xe8] sm:$0xf]
    %v143 = vld [vmem:[#allocation5 + $0xec] sm:$0xf]
    %v144 = vld [vmem:[#allocation5 + $0xf0] sm:$0xf]
    %v145 = vld [vmem:[#allocation5 + $0xf4] sm:$0xf]
    %v146 = vld [vmem:[#allocation5 + $0xf8] sm:$0xf]
    %v147 = vld [vmem:[#allocation5 + $0xfc] sm:$0xf]
    %v148 = vld [vmem:[#allocation5 + $0x100] sm:$0xf]
    %v149 = vld [vmem:[#allocation5 + $0x104] sm:$0xf]
    %v150 = vld [vmem:[#allocation5 + $0x108] sm:$0xf]
    %v151 = vld [vmem:[#allocation5 + $0x10c] sm:$0xf]
    %v152 = vld [vmem:[#allocation5 + $0x110] sm:$0xf]
    %v153 = vld [vmem:[#allocation5 + $0x114] sm:$0xf]
    %v154 = vld [vmem:[#allocation5 + $0x118] sm:$0xf]
    %v155 = vld [vmem:[#allocation5 + $0x11c] sm:$0xf]
    %v156 = vld [vmem:[#allocation5 + $0x120] sm:$0xf]
    %v157 = vld [vmem:[#allocation5 + $0x124] sm:$0xf]
    %v158 = vld [vmem:[#allocation5 + $0x128] sm:$0xf]
    %v159 = vld [vmem:[#allocation5 + $0x12c] sm:$0xf]
    %v160 = vld [vmem:[#allocation5 + $0x130] sm:$0xf]
    %v161 = vld [vmem:[#allocation5 + $0x134] sm:$0xf]
    %v162 = vld [vmem:[#allocation5 + $0x138] sm:$0xf]
    %v163 = vld [vmem:[#allocation5 + $0x13c] sm:$0xf]
    %v164 = vld [vmem:[#allocation5 + $0x140] sm:$0xf]
    %v165 = vld [vmem:[#allocation5 + $0x144] sm:$0xf]
    %v166 = vld [vmem:[#allocation5 + $0x148] sm:$0xf]
    %v167 = vld [vmem:[#allocation5 + $0x14c] sm:$0xf]
    %v168 = vld [vmem:[#allocation5 + $0x150] sm:$0xf]
    %v169 = vld [vmem:[#allocation5 + $0x154] sm:$0xf]
    %v170 = vld [vmem:[#allocation5 + $0x158] sm:$0xf]
    %v171 = vld [vmem:[#allocation5 + $0x15c] sm:$0xf]
    %v172 = vld [vmem:[#allocation5 + $0x160] sm:$0xf]
    %v173 = vld [vmem:[#allocation5 + $0x164] sm:$0xf]
    %v174 = vld [vmem:[#allocation5 + $0x168] sm:$0xf]
    %v175 = vld [vmem:[#allocation5 + $0x16c] sm:$0xf]
    %v176 = vld [vmem:[#allocation5 + $0x170] sm:$0xf]
    %v177 = vld [vmem:[#allocation5 + $0x174] sm:$0xf]
    %v178 = vld [vmem:[#allocation5 + $0x178] sm:$0xf]
    %v179 = vld [vmem:[#allocation5 + $0x17c] sm:$0xf]
    %v180 = vld [vmem:[#allocation5 + $0x180] sm:$0xf]
    %v181 = vld [vmem:[#allocation5 + $0x184] sm:$0xf]
    %v182 = vld [vmem:[#allocation5 + $0x188] sm:$0xf]
    %v183 = vld [vmem:[#allocation5 + $0x18c] sm:$0xf]
    %v184 = vld [vmem:[#allocation5 + $0x190] sm:$0xf]
    %v185 = vld [vmem:[#allocation5 + $0x194] sm:$0xf]
    %v186 = vld [vmem:[#allocation5 + $0x198] sm:$0xf]
    %v187 = vld [vmem:[#allocation5 + $0x19c] sm:$0xf]
    %v188 = vld [vmem:[#allocation5 + $0x1a0] sm:$0xf]
    %v189 = vld [vmem:[#allocation5 + $0x1a4] sm:$0xf]
    %v190 = vld [vmem:[#allocation5 + $0x1a8] sm:$0xf]
    %v191 = vld [vmem:[#allocation5 + $0x1ac] sm:$0xf]
    %v192 = vld [vmem:[#allocation5 + $0x1b0] sm:$0xf]
    %v193 = vld [vmem:[#allocation5 + $0x1b4] sm:$0xf]
    %v194 = vld [vmem:[#allocation5 + $0x1b8] sm:$0xf]
    %v195 = vld [vmem:[#allocation5 + $0x1bc] sm:$0xf]
    %v196 = vld [vmem:[%s2] sm:$0x1]
    %v198 = vlaneseq
    %v199 = vshrl.u32 %v198, 7
    %v200 = vsub.s32 0, %v199
    %v201 = vrot.slane %v196, %v200
    %v315 = vunpack.c.l.b16 %v84
    %v316 = vunpack.c.l.b16 %v85
    %v317 = vunpack.c.l.b16 %v86
    %v318 = vunpack.c.l.b16 %v87
    %v319 = vunpack.c.l.b16 %v88
    %v320 = vunpack.c.l.b16 %v89
    %v321 = vunpack.c.l.b16 %v90
    %v322 = vunpack.c.l.b16 %v91
    %v323 = vunpack.c.l.b16 %v92
    %v324 = vunpack.c.l.b16 %v93
    %v325 = vunpack.c.l.b16 %v94
    %v326 = vunpack.c.l.b16 %v95
    %v327 = vunpack.c.l.b16 %v96
    %v328 = vunpack.c.l.b16 %v97
    %v329 = vunpack.c.l.b16 %v98
    %v330 = vunpack.c.l.b16 %v99
    %v331 = vunpack.c.l.b16 %v100
    %v332 = vunpack.c.l.b16 %v101
    %v333 = vunpack.c.l.b16 %v102
    %v334 = vunpack.c.l.b16 %v103
    %v335 = vunpack.c.l.b16 %v104
    %v336 = vunpack.c.l.b16 %v105
    %v337 = vunpack.c.l.b16 %v106
    %v338 = vunpack.c.l.b16 %v107
    %v339 = vunpack.c.l.b16 %v108
    %v340 = vunpack.c.l.b16 %v109
    %v341 = vunpack.c.l.b16 %v110
    %v342 = vunpack.c.l.b16 %v111
    %v343 = vunpack.c.l.b16 %v112
    %v344 = vunpack.c.l.b16 %v113
    %v345 = vunpack.c.l.b16 %v114
    %v346 = vunpack.c.l.b16 %v115
    %v347 = vunpack.c.l.b16 %v116
    %v348 = vunpack.c.l.b16 %v117
    %v349 = vunpack.c.l.b16 %v118
    %v350 = vunpack.c.l.b16 %v119
    %v351 = vunpack.c.l.b16 %v120
    %v352 = vunpack.c.l.b16 %v121
    %v353 = vunpack.c.l.b16 %v122
    %v354 = vunpack.c.l.b16 %v123
    %v355 = vunpack.c.l.b16 %v124
    %v356 = vunpack.c.l.b16 %v125
    %v357 = vunpack.c.l.b16 %v126
    %v358 = vunpack.c.l.b16 %v127
    %v359 = vunpack.c.l.b16 %v128
    %v360 = vunpack.c.l.b16 %v129
    %v361 = vunpack.c.l.b16 %v130
    %v362 = vunpack.c.l.b16 %v131
    %v363 = vunpack.c.l.b16 %v132
    %v364 = vunpack.c.l.b16 %v133
    %v365 = vunpack.c.l.b16 %v134
    %v366 = vunpack.c.l.b16 %v135
    %v367 = vunpack.c.l.b16 %v136
    %v368 = vunpack.c.l.b16 %v137
    %v369 = vunpack.c.l.b16 %v138
    %v370 = vunpack.c.l.b16 %v139
    %v371 = vunpack.c.l.b16 %v140
    %v372 = vunpack.c.l.b16 %v141
    %v373 = vunpack.c.l.b16 %v142
    %v374 = vunpack.c.l.b16 %v143
    %v375 = vunpack.c.l.b16 %v144
    %v376 = vunpack.c.l.b16 %v145
    %v377 = vunpack.c.l.b16 %v146
    %v378 = vunpack.c.l.b16 %v147
    %v379 = vunpack.c.l.b16 %v148
    %v380 = vunpack.c.l.b16 %v149
    %v381 = vunpack.c.l.b16 %v150
    %v382 = vunpack.c.l.b16 %v151
    %v383 = vunpack.c.l.b16 %v152
    %v384 = vunpack.c.l.b16 %v153
    %v385 = vunpack.c.l.b16 %v154
    %v386 = vunpack.c.l.b16 %v155
    %v387 = vunpack.c.l.b16 %v156
    %v388 = vunpack.c.l.b16 %v157
    %v389 = vunpack.c.l.b16 %v158
    %v390 = vunpack.c.l.b16 %v159
    %v391 = vunpack.c.l.b16 %v160
    %v392 = vunpack.c.l.b16 %v161
    %v393 = vunpack.c.l.b16 %v162
    %v394 = vunpack.c.l.b16 %v163
    %v395 = vunpack.c.l.b16 %v164
    %v396 = vunpack.c.l.b16 %v165
    %v397 = vunpack.c.l.b16 %v166
    %v398 = vunpack.c.l.b16 %v167
    %v399 = vunpack.c.l.b16 %v168
    %v400 = vunpack.c.l.b16 %v169
    %v401 = vunpack.c.l.b16 %v170
    %v402 = vunpack.c.l.b16 %v171
    %v403 = vunpack.c.l.b16 %v172
    %v404 = vunpack.c.l.b16 %v173
    %v405 = vunpack.c.l.b16 %v174
    %v406 = vunpack.c.l.b16 %v175
    %v407 = vunpack.c.l.b16 %v176
    %v408 = vunpack.c.l.b16 %v177
    %v409 = vunpack.c.l.b16 %v178
    %v410 = vunpack.c.l.b16 %v179
    %v411 = vunpack.c.l.b16 %v180
    %v412 = vunpack.c.l.b16 %v181
    %v413 = vunpack.c.l.b16 %v182
    %v414 = vunpack.c.l.b16 %v183
    %v415 = vunpack.c.l.b16 %v184
    %v416 = vunpack.c.l.b16 %v185
    %v417 = vunpack.c.l.b16 %v186
    %v418 = vunpack.c.l.b16 %v187
    %v419 = vunpack.c.l.b16 %v188
    %v420 = vunpack.c.l.b16 %v189
    %v421 = vunpack.c.l.b16 %v190
    %v422 = vunpack.c.l.b16 %v191
    %v423 = vunpack.c.l.b16 %v192
    %v424 = vunpack.c.l.b16 %v193
    %v425 = vunpack.c.l.b16 %v194
    %v426 = vunpack.c.l.b16 %v195
    %v427 = vpack.c.b16 %v316, %v315
    %v428 = vpack.c.b16 %v318, %v317
    %v429 = vpack.c.b16 %v320, %v319
    %v430 = vpack.c.b16 %v322, %v321
    %v431 = vpack.c.b16 %v324, %v323
    %v432 = vpack.c.b16 %v326, %v325
    %v433 = vpack.c.b16 %v328, %v327
    %v434 = vpack.c.b16 %v330, %v329
    %v435 = vpack.c.b16 %v332, %v331
    %v436 = vpack.c.b16 %v334, %v333
    %v437 = vpack.c.b16 %v336, %v335
    %v438 = vpack.c.b16 %v338, %v337
    %v439 = vpack.c.b16 %v340, %v339
    %v440 = vpack.c.b16 %v342, %v341
    %v441 = vpack.c.b16 %v344, %v343
    %v442 = vpack.c.b16 %v346, %v345
    %v443 = vpack.c.b16 %v348, %v347
    %v444 = vpack.c.b16 %v350, %v349
    %v445 = vpack.c.b16 %v352, %v351
    %v446 = vpack.c.b16 %v354, %v353
    %v447 = vpack.c.b16 %v356, %v355
    %v448 = vpack.c.b16 %v358, %v357
    %v449 = vpack.c.b16 %v360, %v359
    %v450 = vpack.c.b16 %v362, %v361
    %v451 = vpack.c.b16 %v364, %v363
    %v452 = vpack.c.b16 %v366, %v365
    %v453 = vpack.c.b16 %v368, %v367
    %v454 = vpack.c.b16 %v370, %v369
    %v455 = vpack.c.b16 %v372, %v371
    %v456 = vpack.c.b16 %v374, %v373
    %v457 = vpack.c.b16 %v376, %v375
    %v458 = vpack.c.b16 %v378, %v377
    %v459 = vpack.c.b16 %v380, %v379
    %v460 = vpack.c.b16 %v382, %v381
    %v461 = vpack.c.b16 %v384, %v383
    %v462 = vpack.c.b16 %v386, %v385
    %v463 = vpack.c.b16 %v388, %v387
    %v464 = vpack.c.b16 %v390, %v389
    %v465 = vpack.c.b16 %v392, %v391
    %v466 = vpack.c.b16 %v394, %v393
    %v467 = vpack.c.b16 %v396, %v395
    %v468 = vpack.c.b16 %v398, %v397
    %v469 = vpack.c.b16 %v400, %v399
    %v470 = vpack.c.b16 %v402, %v401
    %v471 = vpack.c.b16 %v404, %v403
    %v472 = vpack.c.b16 %v406, %v405
    %v473 = vpack.c.b16 %v408, %v407
    %v474 = vpack.c.b16 %v410, %v409
    %v475 = vpack.c.b16 %v412, %v411
    %v476 = vpack.c.b16 %v414, %v413
    %v477 = vpack.c.b16 %v416, %v415
    %v478 = vpack.c.b16 %v418, %v417
    %v479 = vpack.c.b16 %v420, %v419
    %v480 = vpack.c.b16 %v422, %v421
    %v481 = vpack.c.b16 %v424, %v423
    %v482 = vpack.c.b16 %v426, %v425
    %539 = vmatprep.subr.bf16.mxu0 0
    %540 = vmatpush1.bf16.msra.mxu0 %v427
    %541 = vmatprep.subr.bf16.mxu0 0
    %542 = vmatpush1.bf16.msra.mxu0 %v428
    %543 = vmatprep.subr.bf16.mxu0 0
    %544 = vmatpush1.bf16.msra.mxu0 %v429
    %545 = vmatprep.subr.bf16.mxu0 0
    %546 = vmatpush1.bf16.msra.mxu0 %v430
    %547 = vmatprep.subr.bf16.mxu0 0
    %548 = vmatpush1.bf16.msra.mxu0 %v431
    %549 = vmatprep.subr.bf16.mxu0 0
    %550 = vmatpush1.bf16.msra.mxu0 %v432
    %551 = vmatprep.subr.bf16.mxu0 0
    %552 = vmatpush1.bf16.msra.mxu0 %v433
    %553 = vmatprep.subr.bf16.mxu0 0
    %554 = vmatpush1.bf16.msra.mxu0 %v434
    %555 = vmatprep.subr.bf16.mxu0 0
    %556 = vmatpush1.bf16.msra.mxu0 %v435
    %557 = vmatprep.subr.bf16.mxu0 0
    %558 = vmatpush1.bf16.msra.mxu0 %v436
    %559 = vmatprep.subr.bf16.mxu0 0
    %560 = vmatpush1.bf16.msra.mxu0 %v437
    %561 = vmatprep.subr.bf16.mxu0 0
    %562 = vmatpush1.bf16.msra.mxu0 %v438
    %563 = vmatprep.subr.bf16.mxu0 0
    %564 = vmatpush1.bf16.msra.mxu0 %v439
    %565 = vmatprep.subr.bf16.mxu0 0
    %566 = vmatpush1.bf16.msra.mxu0 %v440
    %567 = vmatprep.subr.bf16.mxu0 0
    %568 = vmatpush1.bf16.msra.mxu0 %v441
    %569 = vmatprep.subr.bf16.mxu0 0
    %570 = vmatpush1.bf16.msra.mxu0 %v442
    %571 = vmatprep.mubr.bf16.mxu0 %v78
    %572 = vmatmul.mubr.bf16.gmra.mrb[0].mxu0 %v77
    %v573 = vpop.f32.mrb[0].mxu0
    %v574 = vadd.f32 %v201, %v573
    %v575 = vpop.f32.mrb[0].mxu0
    %v576 = vpop.f32.mrb[0].mxu0
    %v577 = vadd.f32 %v201, %v576
    %v578 = vpop.f32.mrb[0].mxu0
    %579 = vdwg.mxu0
    %580 = vmatprep.subr.bf16.mxu0 0
    %581 = vmatpush1.bf16.msra.mxu0 %v443
    %582 = vmatprep.subr.bf16.mxu0 0
    %583 = vmatpush1.bf16.msra.mxu0 %v444
    %584 = vmatprep.subr.bf16.mxu0 0
    %585 = vmatpush1.bf16.msra.mxu0 %v445
    %586 = vmatprep.subr.bf16.mxu0 0
    %587 = vmatpush1.bf16.msra.mxu0 %v446
    %588 = vmatprep.subr.bf16.mxu0 0
    %589 = vmatpush1.bf16.msra.mxu0 %v447
    %590 = vmatprep.subr.bf16.mxu0 0
    %591 = vmatpush1.bf16.msra.mxu0 %v448
    %592 = vmatprep.subr.bf16.mxu0 0
    %593 = vmatpush1.bf16.msra.mxu0 %v449
    %594 = vmatprep.subr.bf16.mxu0 0
    %595 = vmatpush1.bf16.msra.mxu0 %v450
    %596 = vmatprep.subr.bf16.mxu0 0
    %597 = vmatpush1.bf16.msra.mxu0 %v451
    %598 = vmatprep.subr.bf16.mxu0 0
    %599 = vmatpush1.bf16.msra.mxu0 %v452
    %600 = vmatprep.subr.bf16.mxu0 0
    %601 = vmatpush1.bf16.msra.mxu0 %v453
    %602 = vmatprep.subr.bf16.mxu0 0
    %603 = vmatpush1.bf16.msra.mxu0 %v454
    %604 = vmatprep.subr.bf16.mxu0 0
    %605 = vmatpush1.bf16.msra.mxu0 %v455
    %606 = vmatprep.subr.bf16.mxu0 0
    %607 = vmatpush1.bf16.msra.mxu0 %v456
    %608 = vmatprep.subr.bf16.mxu0 0
    %609 = vmatpush1.bf16.msra.mxu0 %v457
    %610 = vmatprep.subr.bf16.mxu0 0
    %611 = vmatpush1.bf16.msra.mxu0 %v458
    %612 = vmatprep.mubr.bf16.mxu0 %v80
    %613 = vmatmul.mubr.bf16.gmra.mrb[0].mxu0 %v79
    %v614 = vpop.f32.mrb[0].mxu0
    %v615 = vadd.f32 %v574, %v614
    %v616 = vpop.f32.mrb[0].mxu0
    %v617 = vpop.f32.mrb[0].mxu0
    %v618 = vadd.f32 %v577, %v617
    %v619 = vpop.f32.mrb[0].mxu0
    %620 = vdwg.mxu0
    %621 = vmatprep.subr.bf16.mxu0 0
    %622 = vmatpush1.bf16.msra.mxu0 %v459
    %623 = vmatprep.subr.bf16.mxu0 0
    %624 = vmatpush1.bf16.msra.mxu0 %v460
    %625 = vmatprep.subr.bf16.mxu0 0
    %626 = vmatpush1.bf16.msra.mxu0 %v461
    %627 = vmatprep.subr.bf16.mxu0 0
    %628 = vmatpush1.bf16.msra.mxu0 %v462
    %629 = vmatprep.subr.bf16.mxu0 0
    %630 = vmatpush1.bf16.msra.mxu0 %v463
    %631 = vmatprep.subr.bf16.mxu0 0
    %632 = vmatpush1.bf16.msra.mxu0 %v464
    %633 = vmatprep.subr.bf16.mxu0 0
    %634 = vmatpush1.bf16.msra.mxu0 %v465
    %635 = vmatprep.subr.bf16.mxu0 0
    %636 = vmatpush1.bf16.msra.mxu0 %v466
    %637 = vmatprep.subr.bf16.mxu0 0
    %638 = vmatpush1.bf16.msra.mxu0 %v467
    %639 = vmatprep.subr.bf16.mxu0 0
    %640 = vmatpush1.bf16.msra.mxu0 %v468
    %641 = vmatprep.subr.bf16.mxu0 0
    %642 = vmatpush1.bf16.msra.mxu0 %v469
    %643 = vmatprep.subr.bf16.mxu0 0
    %644 = vmatpush1.bf16.msra.mxu0 %v470
    %645 = vmatprep.subr.bf16.mxu0 0
    %646 = vmatpush1.bf16.msra.mxu0 %v471
    %647 = vmatprep.subr.bf16.mxu0 0
    %648 = vmatpush1.bf16.msra.mxu0 %v472
    %649 = vmatprep.subr.bf16.mxu0 0
    %650 = vmatpush1.bf16.msra.mxu0 %v473
    %651 = vmatprep.subr.bf16.mxu0 0
    %652 = vmatpush1.bf16.msra.mxu0 %v474
    %653 = vmatprep.mubr.bf16.mxu0 %v82
    %654 = vmatmul.mubr.bf16.gmra.mrb[0].mxu0 %v81
    %v655 = vpop.f32.mrb[0].mxu0
    %v656 = vadd.f32 %v615, %v655
    %v657 = vpop.f32.mrb[0].mxu0
    %v658 = vpop.f32.mrb[0].mxu0
    %v659 = vadd.f32 %v618, %v658
    %v660 = vpop.f32.mrb[0].mxu0
    %661 = vdwg.mxu0
    %662 = vmatprep.subr.bf16.mxu0 0
    %663 = vmatpush1.bf16.msra.mxu0 %v475
    %664 = vmatprep.subr.bf16.mxu0 0
    %665 = vmatpush1.bf16.msra.mxu0 %v476
    %666 = vmatprep.subr.bf16.mxu0 0
    %667 = vmatpush1.bf16.msra.mxu0 %v477
    %668 = vmatprep.subr.bf16.mxu0 0
    %669 = vmatpush1.bf16.msra.mxu0 %v478
    %670 = vmatprep.subr.bf16.mxu0 0
    %671 = vmatpush1.bf16.msra.mxu0 %v479
    %672 = vmatprep.subr.bf16.mxu0 0
    %673 = vmatpush1.bf16.msra.mxu0 %v480
    %674 = vmatprep.subr.bf16.mxu0 0
    %675 = vmatpush1.bf16.msra.mxu0 %v481
    %676 = vmatprep.subr.bf16.mxu0 0
    %677 = vmatpush1.bf16.msra.mxu0 %v482
    %678 = vmatprep.subr.bf16.mxu0 0
    %679 = vmatpush1.bf16.msra.mxu0 0
    %680 = vmatprep.subr.bf16.mxu0 0
    %681 = vmatpush1.bf16.msra.mxu0 0
    %682 = vmatprep.subr.bf16.mxu0 0
    %683 = vmatpush1.bf16.msra.mxu0 0
    %684 = vmatprep.subr.bf16.mxu0 0
    %685 = vmatpush1.bf16.msra.mxu0 0
    %686 = vmatprep.subr.bf16.mxu0 0
    %687 = vmatpush1.bf16.msra.mxu0 0
    %688 = vmatprep.subr.bf16.mxu0 0
    %689 = vmatpush1.bf16.msra.mxu0 0
    %690 = vmatprep.subr.bf16.mxu0 0
    %691 = vmatpush1.bf16.msra.mxu0 0
    %692 = vmatprep.subr.bf16.mxu0 0
    %693 = vmatpush1.bf16.msra.mxu0 0
    %694 = vmatprep.mubr.bf16.mxu0 0
    %695 = vmatmul.mubr.bf16.gmra.mrb[0].mxu0 %v83
    %v696 = vpop.f32.mrb[0].mxu0
    %v697 = vadd.f32 %v656, %v696
    %v698 = vpop.f32.mrb[0].mxu0
    %v699 = vpop.f32.mrb[0].mxu0
    %v700 = vadd.f32 %v659, %v699
    %v701 = vpop.f32.mrb[0].mxu0
    %702 = vdwg.mxu0
    %v703 = vmax.f32 %v697, 0.0
    %v704 = vmax.f32 %v700, 0.0
    %v705 = vpack.c.bf16 %v704, %v703
    %v706 = vld [vmem:[#allocation7] sm:$0xf]
    %v707 = vld [vmem:[#allocation7 + $0x4] sm:$0xf]
    %v708 = vld [vmem:[#allocation7 + $0x8] sm:$0xf]
    %v709 = vld [vmem:[#allocation7 + $0xc] sm:$0xf]
    %v710 = vld [vmem:[#allocation7 + $0x10] sm:$0xf]
    %v711 = vld [vmem:[#allocation7 + $0x14] sm:$0xf]
    %v712 = vld [vmem:[#allocation7 + $0x18] sm:$0xf]
    %v713 = vld [vmem:[#allocation7 + $0x1c] sm:$0xf]
    %v714 = vld [vmem:[#allocation7 + $0x20] sm:$0xf]
    %v715 = vld [vmem:[#allocation7 + $0x24] sm:$0xf]
    %v716 = vld [vmem:[#allocation7 + $0x28] sm:$0xf]
    %v717 = vld [vmem:[#allocation7 + $0x2c] sm:$0xf]
    %v718 = vld [vmem:[#allocation7 + $0x30] sm:$0xf]
    %v719 = vld [vmem:[#allocation7 + $0x34] sm:$0xf]
    %v720 = vld [vmem:[#allocation7 + $0x38] sm:$0xf]
    %v721 = vld [vmem:[#allocation7 + $0x3c] sm:$0xf]
    %v722 = vld [vmem:[%s4] sm:$0x1]
    %v724 = vlaneseq
    %v725 = vshrl.u32 %v724, 7
    %v726 = vsub.s32 0, %v725
    %v727 = vrot.slane %v722, %v726
    %v745 = vunpack.c.l.b16 %v706
    %v746 = vunpack.c.l.b16 %v707
    %v747 = vunpack.c.l.b16 %v708
    %v748 = vunpack.c.l.b16 %v709
    %v749 = vunpack.c.l.b16 %v710
    %v750 = vunpack.c.l.b16 %v711
    %v751 = vunpack.c.l.b16 %v712
    %v752 = vunpack.c.l.b16 %v713
    %v753 = vunpack.c.l.b16 %v714
    %v754 = vunpack.c.l.b16 %v715
    %v755 = vunpack.c.l.b16 %v716
    %v756 = vunpack.c.l.b16 %v717
    %v757 = vunpack.c.l.b16 %v718
    %v758 = vunpack.c.l.b16 %v719
    %v759 = vunpack.c.l.b16 %v720
    %v760 = vunpack.c.l.b16 %v721
    %v761 = vpack.c.b16 %v746, %v745
    %v762 = vpack.c.b16 %v748, %v747
    %v763 = vpack.c.b16 %v750, %v749
    %v764 = vpack.c.b16 %v752, %v751
    %v765 = vpack.c.b16 %v754, %v753
    %v766 = vpack.c.b16 %v756, %v755
    %v767 = vpack.c.b16 %v758, %v757
    %v768 = vpack.c.b16 %v760, %v759
    %777 = vmatprep.subr.bf16.mxu0 0
    %778 = vmatpush1.bf16.msra.mxu0 %v761
    %779 = vmatprep.subr.bf16.mxu0 0
    %780 = vmatpush1.bf16.msra.mxu0 %v762
    %781 = vmatprep.subr.bf16.mxu0 0
    %782 = vmatpush1.bf16.msra.mxu0 %v763
    %783 = vmatprep.subr.bf16.mxu0 0
    %784 = vmatpush1.bf16.msra.mxu0 %v764
    %785 = vmatprep.subr.bf16.mxu0 0
    %786 = vmatpush1.bf16.msra.mxu0 %v765
    %787 = vmatprep.subr.bf16.mxu0 0
    %788 = vmatpush1.bf16.msra.mxu0 %v766
    %789 = vmatprep.subr.bf16.mxu0 0
    %790 = vmatpush1.bf16.msra.mxu0 %v767
    %791 = vmatprep.subr.bf16.mxu0 0
    %792 = vmatpush1.bf16.msra.mxu0 %v768
    %793 = vmatprep.subr.bf16.mxu0 0
    %794 = vmatpush1.bf16.msra.mxu0 0
    %795 = vmatprep.subr.bf16.mxu0 0
    %796 = vmatpush1.bf16.msra.mxu0 0
    %797 = vmatprep.subr.bf16.mxu0 0
    %798 = vmatpush1.bf16.msra.mxu0 0
    %799 = vmatprep.subr.bf16.mxu0 0
    %800 = vmatpush1.bf16.msra.mxu0 0
    %801 = vmatprep.subr.bf16.mxu0 0
    %802 = vmatpush1.bf16.msra.mxu0 0
    %803 = vmatprep.subr.bf16.mxu0 0
    %804 = vmatpush1.bf16.msra.mxu0 0
    %805 = vmatprep.subr.bf16.mxu0 0
    %806 = vmatpush1.bf16.msra.mxu0 0
    %807 = vmatprep.subr.bf16.mxu0 0
    %808 = vmatpush1.bf16.msra.mxu0 0
    %809 = vmatprep.mubr.bf16.mxu0 0
    %810 = vmatmul.mubr.bf16.gmra.mrb[0].mxu0 %v705
    %v811 = vpop.f32.mrb[0].mxu0
    %v812 = vadd.f32 %v727, %v811
    %v813 = vpop.f32.mrb[0].mxu0
    %v814 = vpop.f32.mrb[0].mxu0
    %v815 = vadd.f32 %v727, %v814
    %v816 = vpop.f32.mrb[0].mxu0
    %817 = vdwg.mxu0
    %818 = vst [vmem:[#allocation8] sm:$0xff] %v812
    %819 = vst [vmem:[#allocation8 + $0x8] sm:$0xff] %v815
    // Predicated region
    $region34: #{tpu_custom_call.1} parent=1 // pred_check
      _
    $region35: #{tpu_custom_call.1} parent=1 // pred_check_branch
      %821 = sbr.rel (0) target = $region37
    $region36: #{tpu_custom_call.1} parent=1 // pred_region
      %s823 = ssub.s32 256, 256
      %824 = vsyncadd [#allocation4], %s823
      %s825 = sshll.u32 [#allocation8], 4
      %s826 = int_to_ptr.vmem [resolvable:$true] %s825
      %831 = dma.vmem_to_hbm [thread:$0]  %s826, 256, %s5, [#allocation4], 128, 128, 8
    $region37: #{tpu_custom_call.1} parent=1 // pred_fallthru
      _
    // Predicated region
    $region38: #{tpu_custom_call.1} parent=1 // pred_check
      _
    $region39: #{tpu_custom_call.1} parent=1 // pred_check_branch
      %833 = sbr.rel (0) target = $region41
    $region40: #{tpu_custom_call.1} parent=1 // pred_region
      %834 = dma.done [#allocation4], 256
    $region41: #{tpu_custom_call.1} parent=1 // pred_fallthru
      _
    %835 = vsyncpa [#allocation3], 1
    %836 = vsyncpa [#allocation6], 1
    %837 = vsyncpa [#allocation4], 1

</llo_original>
